<compile_context>
chip_gen: v6e
topology: v6e:2x2x1
jax: 0.10.0
libtpu: 0.0.40
codegen_flags: <defaults>
</compile_context>

<pallas_src>
import functools

import jax
import jax.numpy as jnp
from jax.experimental import pallas as pl
from jax.experimental.pallas import tpu as pltpu


# --------------------------------------------------------------------------------------
# Pallas kernels
# --------------------------------------------------------------------------------------
def _matmul_bias_act_kernel(x_ref, w_ref, b_ref, o_ref, acc_ref, *, activation):
    """Tiled matmul with fused bias + activation.  Grid = (M/tm, N/tn, K/tk)."""
    @pl.when(pl.program_id(2) == 0)
    def _():
        acc_ref[...] = jnp.zeros_like(acc_ref)

    acc_ref[...] += jnp.dot(x_ref[...], w_ref[...], preferred_element_type=jnp.float32)

    @pl.when(pl.program_id(2) == pl.num_programs(2) - 1)
    def _():
        y = acc_ref[...] + b_ref[...]
        if activation == "relu":
            y = jnp.maximum(y, 0.0)
        o_ref[...] = y.astype(o_ref.dtype)


def _conv_s2_kernel(x_ref, w_ref, b_ref, o_ref, *, Ho, Wo):
    """4x4 / stride-2 / pad-1 conv + ReLU for one batch element.

    x_ref : (4*(Ho+1), C, Wo+1)  phase-split padded input; row index =
                                 (row_parity*2 + col_parity)*(Ho+1) + phase_row
    w_ref : (Cout, 16*C)         k index = (ky*4 + kx)*C + c
    b_ref : (Cout, 1)
    o_ref : (Ho, Cout, Wo)
    """
    wmat = w_ref[...]
    bias = b_ref[...]

    def body(i, carry):
        pieces = []
        for ky in range(4):
            for kx in range(4):
                pidx = (ky % 2) * 2 + (kx % 2)
                u, v = ky // 2, kx // 2
                row = x_ref[pidx * (Ho + 1) + u + i]            # (C, Wo+1)
                pieces.append(row[:, v:v + Wo])                  # (C, Wo)
        patch = jnp.concatenate(pieces, axis=0)                  # (16*C, Wo)
        y = jnp.dot(wmat, patch, preferred_element_type=jnp.float32) + bias
        o_ref[i] = jnp.maximum(y, 0.0)
        return carry

    jax.lax.fori_loop(0, Ho, body, 0)


def _tconv_s2_kernel(x_ref, w_ref, b_ref, o_ref, *, H, W, activation):
    """4x4 / stride-2 / pad-1 transposed conv (one batch element), phase-decomposed output.

    x_ref : (H+2, C, W+2)    zero-padded input
    w_ref : (4, Cout, 4*C)   per-output-phase weights, k index = (u*2+v)*C + c
    b_ref : (Cout, 1)
    o_ref : (4*H, Cout, W)   phase (a,b) row i at (a*2+b)*H + i;
                             full output[2i+a, :, 2j+b] = o[(a*2+b)*H+i, :, j]
    """
    bias = b_ref[...]
    for a in range(2):
        for bph in range(2):
            p = a * 2 + bph
            wmat = w_ref[p]                                      # (Cout, 4*C)

            def body(i, carry, a=a, bph=bph, p=p, wmat=wmat):
                pieces = []
                for u in range(2):
                    for v in range(2):
                        row = x_ref[i + a + u]                   # (C, W+2)
                        pieces.append(row[:, bph + v:bph + v + W])
                patch = jnp.concatenate(pieces, axis=0)          # (4*C, W)
                y = jnp.dot(wmat, patch, preferred_element_type=jnp.float32) + bias
                if activation == "relu":
                    y = jnp.maximum(y, 0.0)
                else:
                    y = jax.nn.sigmoid(y)
                o_ref[p * H + i] = y
                return carry

            jax.lax.fori_loop(0, H, body, 0)


def _latent_head_kernel(h_ref, wml_ref, bml_ref, eps_ref, wdi_ref, bdi_ref,
                        mu_ref, lv_ref, d0_ref, *, latent_dim):
    """Fused: [mu | log_var] = h@Wml + b ; z = mu + eps*exp(0.5*log_var) ; d0 = z@Wdi + b."""
    h = h_ref[...]
    y = jnp.dot(h, wml_ref[...], preferred_element_type=jnp.float32) + bml_ref[...]
    mu = y[:, :latent_dim]
    lv = y[:, latent_dim:]
    mu_ref[...] = mu
    lv_ref[...] = lv
    z = mu + eps_ref[...] * jnp.exp(0.5 * lv)
    d0_ref[...] = jnp.dot(z, wdi_ref[...], preferred_element_type=jnp.float32) + bdi_ref[...]


# --------------------------------------------------------------------------------------
# Wrappers
# --------------------------------------------------------------------------------------
def _round_up(x, m):
    return ((x + m - 1) // m) * m


def pallas_linear(x, w, b, activation="none"):
    """act(x @ w + b) with f32 accumulation.  x:(M,K), w:(K,N) (may be bf16), b:(N,) f32."""
    M, K = x.shape
    K2, N = w.shape
    assert K == K2
    tm = _round_up(min(M, 256), 8)
    tn = min(_round_up(N, 128), 512 if N <= 1024 else 2048)
    tk = min(_round_up(K, 128), 2048)
    M_pad, N_pad, K_pad = _round_up(M, tm), _round_up(N, tn), _round_up(K, tk)
    xp = jnp.pad(x, ((0, M_pad - M), (0, K_pad - K)))
    wp = jnp.pad(w, ((0, K_pad - K), (0, N_pad - N)))
    bp = jnp.pad(b.astype(jnp.float32), ((0, N_pad - N),)).reshape(1, N_pad)
    out = pl.pallas_call(
        functools.partial(_matmul_bias_act_kernel, activation=activation),
        out_shape=jax.ShapeDtypeStruct((M_pad, N_pad), jnp.float32),
        grid=(M_pad // tm, N_pad // tn, K_pad // tk),
        in_specs=[
            pl.BlockSpec((tm, tk), lambda i, j, k: (i, k)),
            pl.BlockSpec((tk, tn), lambda i, j, k: (k, j)),
            pl.BlockSpec((1, tn), lambda i, j, k: (0, j)),
        ],
        out_specs=pl.BlockSpec((tm, tn), lambda i, j, k: (i, j)),
        scratch_shapes=[pltpu.VMEM((tm, tn), jnp.float32)],
        compiler_params=pltpu.CompilerParams(
            dimension_semantics=("parallel", "parallel", "arbitrary")),
    )(xp, wp, bp)
    return out[:M, :N]


def pallas_conv_s2(x_hcw, w_mat, bias):
    """x_hcw: (B, H, C, W); w_mat: (Cout, 16*C); bias: (Cout, 1).
    Returns ReLU(Conv2d(k=4, s=2, p=1)) as (B, H//2, Cout, W//2)."""
    B, H, C, W = x_hcw.shape
    Cout = w_mat.shape[0]
    Ho, Wo = H // 2, W // 2
    xp = jnp.pad(x_hcw, ((0, 0), (1, 1), (0, 0), (1, 1)))
    xs = xp.reshape(B, Ho + 1, 2, C, Wo + 1, 2).transpose(0, 2, 5, 1, 3, 4)
    xs = xs.reshape(B, 4 * (Ho + 1), C, Wo + 1)
    return pl.pallas_call(
        functools.partial(_conv_s2_kernel, Ho=Ho, Wo=Wo),
        out_shape=jax.ShapeDtypeStruct((B, Ho, Cout, Wo), jnp.float32),
        grid=(B,),
        in_specs=[
            pl.BlockSpec((None, 4 * (Ho + 1), C, Wo + 1), lambda b: (b, 0, 0, 0)),
            pl.BlockSpec((Cout, 16 * C), lambda b: (0, 0)),
            pl.BlockSpec((Cout, 1), lambda b: (0, 0)),
        ],
        out_specs=pl.BlockSpec((None, Ho, Cout, Wo), lambda b: (b, 0, 0, 0)),
        compiler_params=pltpu.CompilerParams(dimension_semantics=("parallel",)),
    )(xs, w_mat, bias)


def pallas_conv_transpose_s2(x_hcw, w_phase, bias, activation):
    """x_hcw: (B, H, C, W); w_phase: (4, Cout, 4*C); bias: (Cout, 1).
    Returns act(ConvTranspose2d(k=4, s=2, p=1)) as (B, 2H, Cout, 2W)."""
    B, H, C, W = x_hcw.shape
    Cout = w_phase.shape[1]
    xp = jnp.pad(x_hcw, ((0, 0), (1, 1), (0, 0), (1, 1)))
    out = pl.pallas_call(
        functools.partial(_tconv_s2_kernel, H=H, W=W, activation=activation),
        out_shape=jax.ShapeDtypeStruct((B, 4 * H, Cout, W), jnp.float32),
        grid=(B,),
        in_specs=[
            pl.BlockSpec((None, H + 2, C, W + 2), lambda b: (b, 0, 0, 0)),
            pl.BlockSpec((4, Cout, 4 * C), lambda b: (0, 0, 0)),
            pl.BlockSpec((Cout, 1), lambda b: (0, 0)),
        ],
        out_specs=pl.BlockSpec((None, 4 * H, Cout, W), lambda b: (b, 0, 0, 0)),
        compiler_params=pltpu.CompilerParams(dimension_semantics=("parallel",)),
    )(xp, w_phase, bias)
    # Interleave the 4 output phases back to full resolution (tiny HBM shuffle).
    o = out.reshape(B, 2, 2, H, Cout, W).transpose(0, 3, 1, 4, 5, 2)
    return o.reshape(B, 2 * H, Cout, 2 * W)


def pallas_latent_head(h, w_mu_lv, b_mu_lv, eps, w_dec_in, b_dec_in):
    B, D = h.shape
    L = eps.shape[1]
    Dd = w_dec_in.shape[1]
    full = lambda s: pl.BlockSpec(s, lambda: tuple(0 for _ in s))
    return pl.pallas_call(
        functools.partial(_latent_head_kernel, latent_dim=L),
        out_shape=(jax.ShapeDtypeStruct((B, L), jnp.float32),
                   jax.ShapeDtypeStruct((B, L), jnp.float32),
                   jax.ShapeDtypeStruct((B, Dd), jnp.float32)),
        in_specs=[full((B, D)), full((D, 2 * L)), full((1, 2 * L)),
                  full((B, L)), full((L, Dd)), full((1, Dd))],
        out_specs=(full((B, L)), full((B, L)), full((B, Dd))),
    )(h, w_mu_lv, b_mu_lv, eps, w_dec_in, b_dec_in)


# --------------------------------------------------------------------------------------
# Parameters (PyTorch layouts) and one-time re-layout for the kernels
# --------------------------------------------------------------------------------------
def init_params(key, latent_dim):
    def nrm(k, shape, scale=0.02):
        return (scale * jax.random.normal(k, shape)).astype(jnp.float32)

    ks = iter(jax.random.split(key, 32))
    p = {}
    for name, cin, cout in [("c1", 1, 16), ("c2", 16, 32), ("c3", 32, 64), ("c4", 64, 128)]:
        p[name + "_w"] = nrm(next(ks), (cout, cin, 4, 4))
        p[name + "_b"] = nrm(next(ks), (cout,))
    p["enc_fc_w"] = nrm(next(ks), (128 * 16 * 16, 1024), 0.005)
    p["enc_fc_b"] = nrm(next(ks), (1024,))
    p["mu_w"] = nrm(next(ks), (1024, latent_dim))
    p["mu_b"] = nrm(next(ks), (latent_dim,))
    p["lv_w"] = nrm(next(ks), (1024, latent_dim))
    p["lv_b"] = nrm(next(ks), (latent_dim,))
    p["dec_in_w"] = nrm(next(ks), (latent_dim, 1024))
    p["dec_in_b"] = nrm(next(ks), (1024,))
    p["dec_fc_w"] = nrm(next(ks), (1024, 128 * 16 * 16), 0.005)
    p["dec_fc_b"] = nrm(next(ks), (128 * 16 * 16,))
    for name, cin, cout in [("d1", 128, 64), ("d2", 64, 32), ("d3", 32, 16), ("d4", 16, 1)]:
        p[name + "_w"] = nrm(next(ks), (cin, cout, 4, 4))
        p[name + "_b"] = nrm(next(ks), (cout,))
    return p


def _conv_weight_to_mat(w):
    # Conv2d weight (Cout, Cin, 4, 4) -> (Cout, 16*Cin); k = (ky*4+kx)*Cin + cin
    Cout, Cin = w.shape[0], w.shape[1]
    return w.transpose(0, 2, 3, 1).reshape(Cout, 16 * Cin)


def _tconv_weight_to_phases(w):
    # ConvTranspose2d weight (Cin, Cout, 4, 4) -> (4, Cout, 4*Cin);
    # output phase (a,b), tap (u,v) uses kernel element (3-a-2u, 3-b-2v).
    Cin, Cout = w.shape[0], w.shape[1]
    wp = jnp.zeros((4, Cout, 4 * Cin), jnp.float32)
    for a in range(2):
        for b in range(2):
            for u in range(2):
                for v in range(2):
                    sub = w[:, :, 3 - a - 2 * u, 3 - b - 2 * v].T        # (Cout, Cin)
                    wp = wp.at[a * 2 + b, :,
                               (u * 2 + v) * Cin:(u * 2 + v + 1) * Cin].set(sub)
    return wp


def prepare_params(p):
    q = {}
    for name in ("c1", "c2", "c3", "c4"):
        q[name + "_w"] = _conv_weight_to_mat(p[name + "_w"])
        q[name + "_b"] = p[name + "_b"].reshape(-1, 1)
    for name in ("d1", "d2", "d3", "d4"):
        q[name + "_w"] = _tconv_weight_to_phases(p[name + "_w"])
        q[name + "_b"] = p[name + "_b"].reshape(-1, 1)
    # The two huge FC weights are streamed in bf16 (f32 accumulation + f32 epilogue in-kernel).
    q["enc_fc_w"] = p["enc_fc_w"].astype(jnp.bfloat16)
    q["enc_fc_b"] = p["enc_fc_b"]
    q["dec_fc_w"] = p["dec_fc_w"].astype(jnp.bfloat16)
    q["dec_fc_b"] = p["dec_fc_b"]
    q["mu_lv_w"] = jnp.concatenate([p["mu_w"], p["lv_w"]], axis=1)
    q["mu_lv_b"] = jnp.concatenate([p["mu_b"], p["lv_b"]]).reshape(1, -1)
    q["dec_in_w"] = p["dec_in_w"]
    q["dec_in_b"] = p["dec_in_b"].reshape(1, -1)
    return q


# --------------------------------------------------------------------------------------
# VAE forward
# --------------------------------------------------------------------------------------
def vae_forward(params, x, eps):
    p = params
    B = x.shape[0]
    # ---- encode (activations kept as (B, H, C, W); width stays on the lane axis) ----
    h = x.transpose(0, 2, 1, 3)                                    # (B, 256, 1, 256)
    h = pallas_conv_s2(h, p["c1_w"], p["c1_b"])                    # (B, 128, 16, 128)
    h = pallas_conv_s2(h, p["c2_w"], p["c2_b"])                    # (B, 64, 32, 64)
    h = pallas_conv_s2(h, p["c3_w"], p["c3_b"])                    # (B, 32, 64, 32)
    h = pallas_conv_s2(h, p["c4_w"], p["c4_b"])                    # (B, 16, 128, 16)
    h = h.transpose(0, 2, 1, 3).reshape(B, 128 * 16 * 16)          # PyTorch NCHW flatten order
    h = pallas_linear(h.astype(jnp.bfloat16), p["enc_fc_w"], p["enc_fc_b"], "relu")   # (B,1024)
    # ---- fused mu / log_var / reparameterize / decoder_input ----
    mu, log_var, d = pallas_latent_head(h, p["mu_lv_w"], p["mu_lv_b"], eps,
                                        p["dec_in_w"], p["dec_in_b"])
    # ---- decode ----
    d = pallas_linear(d.astype(jnp.bfloat16), p["dec_fc_w"], p["dec_fc_b"], "relu")   # (B,32768)
    d = d.reshape(B, 128, 16, 16).transpose(0, 2, 1, 3)            # (B, 16, 128, 16)
    d = pallas_conv_transpose_s2(d, p["d1_w"], p["d1_b"], "relu")       # (B, 32, 64, 32)
    d = pallas_conv_transpose_s2(d, p["d2_w"], p["d2_b"], "relu")       # (B, 64, 32, 64)
    d = pallas_conv_transpose_s2(d, p["d3_w"], p["d3_b"], "relu")       # (B, 128, 16, 128)
    d = pallas_conv_transpose_s2(d, p["d4_w"], p["d4_b"], "sigmoid")    # (B, 256, 1, 256)
    recon = d.transpose(0, 2, 1, 3)                                # (B, 1, 256, 256)
    return recon, mu, log_var


# --------------------------------------------------------------------------------------
# Small correctness self-check of the conv / tconv kernels against XLA references
# --------------------------------------------------------------------------------------
def _self_check():
    key = jax.random.PRNGKey(1)
    k1, k2, k3, k4, k5, k6 = jax.random.split(key, 6)
    # Conv2d(k=4, s=2, p=1) + ReLU
    B, C, H, W, Co = 1, 3, 16, 16, 8
    x = jax.random.normal(k1, (B, C, H, W), jnp.float32)
    w = 0.1 * jax.random.normal(k2, (Co, C, 4, 4), jnp.float32)
    b = 0.1 * jax.random.normal(k3, (Co,), jnp.float32)
    ref = jax.lax.conv_general_dilated(x, w, (2, 2), ((1, 1), (1, 1)),
                                       dimension_numbers=("NCHW", "OIHW", "NCHW"),
                                       precision=jax.lax.Precision.HIGHEST)
    ref = jnp.maximum(ref + b[None, :, None, None], 0.0)
    got = pallas_conv_s2(x.transpose(0, 2, 1, 3), _conv_weight_to_mat(w),
                         b.reshape(-1, 1)).transpose(0, 2, 1, 3)
    assert jnp.allclose(ref, got, atol=2e-3, rtol=2e-3), "conv2d self-check failed"
    # ConvTranspose2d(k=4, s=2, p=1) + ReLU
    B, C, H, W, Co = 1, 5, 8, 8, 3
    x = jax.random.normal(k4, (B, C, H, W), jnp.float32)
    w = 0.1 * jax.random.normal(k5, (C, Co, 4, 4), jnp.float32)
    b = 0.1 * jax.random.normal(k6, (Co,), jnp.float32)
    wflip = w.transpose(1, 0, 2, 3)[:, :, ::-1, ::-1]
    ref = jax.lax.conv_general_dilated(x, wflip, (1, 1), ((2, 2), (2, 2)),
                                       lhs_dilation=(2, 2),
                                       dimension_numbers=("NCHW", "OIHW", "NCHW"),
                                       precision=jax.lax.Precision.HIGHEST)
    ref = jnp.maximum(ref + b[None, :, None, None], 0.0)
    got = pallas_conv_transpose_s2(x.transpose(0, 2, 1, 3), _tconv_weight_to_phases(w),
                                   b.reshape(-1, 1), "relu").transpose(0, 2, 1, 3)
    assert jnp.allclose(ref, got, atol=2e-3, rtol=2e-3), "conv_transpose2d self-check failed"


if __name__ == "__main__":
    latent_dim = 32
    B = 2
    key = jax.random.PRNGKey(0)
    k_param, k_x, k_eps = jax.random.split(key, 3)

    _self_check()

    params = prepare_params(init_params(k_param, latent_dim))
    # input must be 256x256 so that four stride-2 convs land on 16x16 (the 128*16*16 Flatten)
    x = jax.random.uniform(k_x, (B, 1, 256, 256), dtype=jnp.float32)
    eps = jax.random.normal(k_eps, (B, latent_dim), dtype=jnp.float32)

    fwd = jax.jit(vae_forward)
    recon, mu, log_var = fwd(params, x, eps)
    jax.block_until_ready((recon, mu, log_var))

    assert recon.shape == (B, 1, 256, 256)
    assert mu.shape == (B, latent_dim) and log_var.shape == (B, latent_dim)
    assert bool(jnp.all(jnp.isfinite(recon)))
    print("KERNEL_OK")
</pallas_src>

<mosaic_0001>
module attributes {stable_mosaic.version = 11 : i64} {
  func.func @_conv_s2_kernel(%arg0: i32, %arg1: memref<1x36x3x9xf32, #tpu.memory_space<vmem>>, %arg2: memref<8x48xf32, #tpu.memory_space<vmem>>, %arg3: memref<8x1xf32, #tpu.memory_space<vmem>>, %arg4: memref<1x8x8x8xf32, #tpu.memory_space<vmem>>) attributes {dimension_semantics = [#tpu.dimension_semantics<parallel>], iteration_bounds = array<i64: 1>, scalar_prefetch = 0 : i64, scratch_operands = 0 : i64, tpu.core_type = #tpu.core_type<tc>, window_params = [{transform_indices = @transform_0, window_bounds = array<i64: 1, 36, 3, 9>}, {pipeline_mode = #tpu.pipeline_mode<synchronous>, transform_indices = @transform_1, window_bounds = array<i64: 8, 48>}, {pipeline_mode = #tpu.pipeline_mode<synchronous>, transform_indices = @transform_2, window_bounds = array<i64: 8, 1>}, {transform_indices = @transform_3, window_bounds = array<i64: 1, 8, 8, 8>}]} {
    %c0 = arith.constant 0 : index
    %c0_0 = arith.constant 0 : index
    %0 = vector.load %arg2[%c0, %c0_0] : memref<8x48xf32, #tpu.memory_space<vmem>>, vector<8x48xf32>
    %c0_1 = arith.constant 0 : index
    %c0_2 = arith.constant 0 : index
    %1 = vector.load %arg3[%c0_1, %c0_2] : memref<8x1xf32, #tpu.memory_space<vmem>>, vector<8x1xf32>
    %c0_i32 = arith.constant 0 : i32
    %c8_i32 = arith.constant 8 : i32
    %2 = arith.addi %c0_i32, %c8_i32 : i32
    %c1_i32 = arith.constant 1 : i32
    scf.for %arg5 = %c0_i32 to %2 step %c1_i32  : i32 {
      %c0_i32_4 = arith.constant 0 : i32
      %3 = arith.addi %c0_i32_4, %arg5 : i32
      %c0_5 = arith.constant 0 : index
      %4 = arith.index_cast %3 : i32 to index
      %c0_6 = arith.constant 0 : index
      %c0_7 = arith.constant 0 : index
      %5 = vector.load %arg1[%c0_5, %4, %c0_6, %c0_7] : memref<1x36x3x9xf32, #tpu.memory_space<vmem>>, vector<1x1x3x9xf32>
      %6 = vector.shape_cast %5 : vector<1x1x3x9xf32> to vector<3x9xf32>
      %7 = vector.extract_strided_slice %6 {offsets = [0, 0], sizes = [3, 8], strides = [1, 1]} : vector<3x9xf32> to vector<3x8xf32>
      %c9_i32 = arith.constant 9 : i32
      %8 = arith.addi %c9_i32, %arg5 : i32
      %c0_8 = arith.constant 0 : index
      %9 = arith.index_cast %8 : i32 to index
      %c0_9 = arith.constant 0 : index
      %c0_10 = arith.constant 0 : index
      %10 = vector.load %arg1[%c0_8, %9, %c0_9, %c0_10] : memref<1x36x3x9xf32, #tpu.memory_space<vmem>>, vector<1x1x3x9xf32>
      %11 = vector.shape_cast %10 : vector<1x1x3x9xf32> to vector<3x9xf32>
      %12 = vector.extract_strided_slice %11 {offsets = [0, 0], sizes = [3, 8], strides = [1, 1]} : vector<3x9xf32> to vector<3x8xf32>
      %c0_i32_11 = arith.constant 0 : i32
      %13 = arith.addi %c0_i32_11, %arg5 : i32
      %c0_12 = arith.constant 0 : index
      %14 = arith.index_cast %13 : i32 to index
      %c0_13 = arith.constant 0 : index
      %c0_14 = arith.constant 0 : index
      %15 = vector.load %arg1[%c0_12, %14, %c0_13, %c0_14] : memref<1x36x3x9xf32, #tpu.memory_space<vmem>>, vector<1x1x3x9xf32>
      %16 = vector.shape_cast %15 : vector<1x1x3x9xf32> to vector<3x9xf32>
      %17 = vector.extract_strided_slice %16 {offsets = [0, 1], sizes = [3, 8], strides = [1, 1]} : vector<3x9xf32> to vector<3x8xf32>
      %c9_i32_15 = arith.constant 9 : i32
      %18 = arith.addi %c9_i32_15, %arg5 : i32
      %c0_16 = arith.constant 0 : index
      %19 = arith.index_cast %18 : i32 to index
      %c0_17 = arith.constant 0 : index
      %c0_18 = arith.constant 0 : index
      %20 = vector.load %arg1[%c0_16, %19, %c0_17, %c0_18] : memref<1x36x3x9xf32, #tpu.memory_space<vmem>>, vector<1x1x3x9xf32>
      %21 = vector.shape_cast %20 : vector<1x1x3x9xf32> to vector<3x9xf32>
      %22 = vector.extract_strided_slice %21 {offsets = [0, 1], sizes = [3, 8], strides = [1, 1]} : vector<3x9xf32> to vector<3x8xf32>
      %c18_i32 = arith.constant 18 : i32
      %23 = arith.addi %c18_i32, %arg5 : i32
      %c0_19 = arith.constant 0 : index
      %24 = arith.index_cast %23 : i32 to index
      %c0_20 = arith.constant 0 : index
      %c0_21 = arith.constant 0 : index
      %25 = vector.load %arg1[%c0_19, %24, %c0_20, %c0_21] : memref<1x36x3x9xf32, #tpu.memory_space<vmem>>, vector<1x1x3x9xf32>
      %26 = vector.shape_cast %25 : vector<1x1x3x9xf32> to vector<3x9xf32>
      %27 = vector.extract_strided_slice %26 {offsets = [0, 0], sizes = [3, 8], strides = [1, 1]} : vector<3x9xf32> to vector<3x8xf32>
      %c27_i32 = arith.constant 27 : i32
      %28 = arith.addi %c27_i32, %arg5 : i32
      %c0_22 = arith.constant 0 : index
      %29 = arith.index_cast %28 : i32 to index
      %c0_23 = arith.constant 0 : index
      %c0_24 = arith.constant 0 : index
      %30 = vector.load %arg1[%c0_22, %29, %c0_23, %c0_24] : memref<1x36x3x9xf32, #tpu.memory_space<vmem>>, vector<1x1x3x9xf32>
      %31 = vector.shape_cast %30 : vector<1x1x3x9xf32> to vector<3x9xf32>
      %32 = vector.extract_strided_slice %31 {offsets = [0, 0], sizes = [3, 8], strides = [1, 1]} : vector<3x9xf32> to vector<3x8xf32>
      %c18_i32_25 = arith.constant 18 : i32
      %33 = arith.addi %c18_i32_25, %arg5 : i32
      %c0_26 = arith.constant 0 : index
      %34 = arith.index_cast %33 : i32 to index
      %c0_27 = arith.constant 0 : index
      %c0_28 = arith.constant 0 : index
      %35 = vector.load %arg1[%c0_26, %34, %c0_27, %c0_28] : memref<1x36x3x9xf32, #tpu.memory_space<vmem>>, vector<1x1x3x9xf32>
      %36 = vector.shape_cast %35 : vector<1x1x3x9xf32> to vector<3x9xf32>
      %37 = vector.extract_strided_slice %36 {offsets = [0, 1], sizes = [3, 8], strides = [1, 1]} : vector<3x9xf32> to vector<3x8xf32>
      %c27_i32_29 = arith.constant 27 : i32
      %38 = arith.addi %c27_i32_29, %arg5 : i32
      %c0_30 = arith.constant 0 : index
      %39 = arith.index_cast %38 : i32 to index
      %c0_31 = arith.constant 0 : index
      %c0_32 = arith.constant 0 : index
      %40 = vector.load %arg1[%c0_30, %39, %c0_31, %c0_32] : memref<1x36x3x9xf32, #tpu.memory_space<vmem>>, vector<1x1x3x9xf32>
      %41 = vector.shape_cast %40 : vector<1x1x3x9xf32> to vector<3x9xf32>
      %42 = vector.extract_strided_slice %41 {offsets = [0, 1], sizes = [3, 8], strides = [1, 1]} : vector<3x9xf32> to vector<3x8xf32>
      %c1_i32_33 = arith.constant 1 : i32
      %43 = arith.addi %c1_i32_33, %arg5 : i32
      %c0_34 = arith.constant 0 : index
      %44 = arith.index_cast %43 : i32 to index
      %c0_35 = arith.constant 0 : index
      %c0_36 = arith.constant 0 : index
      %45 = vector.load %arg1[%c0_34, %44, %c0_35, %c0_36] : memref<1x36x3x9xf32, #tpu.memory_space<vmem>>, vector<1x1x3x9xf32>
      %46 = vector.shape_cast %45 : vector<1x1x3x9xf32> to vector<3x9xf32>
      %47 = vector.extract_strided_slice %46 {offsets = [0, 0], sizes = [3, 8], strides = [1, 1]} : vector<3x9xf32> to vector<3x8xf32>
      %c10_i32 = arith.constant 10 : i32
      %48 = arith.addi %c10_i32, %arg5 : i32
      %c0_37 = arith.constant 0 : index
      %49 = arith.index_cast %48 : i32 to index
      %c0_38 = arith.constant 0 : index
      %c0_39 = arith.constant 0 : index
      %50 = vector.load %arg1[%c0_37, %49, %c0_38, %c0_39] : memref<1x36x3x9xf32, #tpu.memory_space<vmem>>, vector<1x1x3x9xf32>
      %51 = vector.shape_cast %50 : vector<1x1x3x9xf32> to vector<3x9xf32>
      %52 = vector.extract_strided_slice %51 {offsets = [0, 0], sizes = [3, 8], strides = [1, 1]} : vector<3x9xf32> to vector<3x8xf32>
      %c1_i32_40 = arith.constant 1 : i32
      %53 = arith.addi %c1_i32_40, %arg5 : i32
      %c0_41 = arith.constant 0 : index
      %54 = arith.index_cast %53 : i32 to index
      %c0_42 = arith.constant 0 : index
      %c0_43 = arith.constant 0 : index
      %55 = vector.load %arg1[%c0_41, %54, %c0_42, %c0_43] : memref<1x36x3x9xf32, #tpu.memory_space<vmem>>, vector<1x1x3x9xf32>
      %56 = vector.shape_cast %55 : vector<1x1x3x9xf32> to vector<3x9xf32>
      %57 = vector.extract_strided_slice %56 {offsets = [0, 1], sizes = [3, 8], strides = [1, 1]} : vector<3x9xf32> to vector<3x8xf32>
      %c10_i32_44 = arith.constant 10 : i32
      %58 = arith.addi %c10_i32_44, %arg5 : i32
      %c0_45 = arith.constant 0 : index
      %59 = arith.index_cast %58 : i32 to index
      %c0_46 = arith.constant 0 : index
      %c0_47 = arith.constant 0 : index
      %60 = vector.load %arg1[%c0_45, %59, %c0_46, %c0_47] : memref<1x36x3x9xf32, #tpu.memory_space<vmem>>, vector<1x1x3x9xf32>
      %61 = vector.shape_cast %60 : vector<1x1x3x9xf32> to vector<3x9xf32>
      %62 = vector.extract_strided_slice %61 {offsets = [0, 1], sizes = [3, 8], strides = [1, 1]} : vector<3x9xf32> to vector<3x8xf32>
      %c19_i32 = arith.constant 19 : i32
      %63 = arith.addi %c19_i32, %arg5 : i32
      %c0_48 = arith.constant 0 : index
      %64 = arith.index_cast %63 : i32 to index
      %c0_49 = arith.constant 0 : index
      %c0_50 = arith.constant 0 : index
      %65 = vector.load %arg1[%c0_48, %64, %c0_49, %c0_50] : memref<1x36x3x9xf32, #tpu.memory_space<vmem>>, vector<1x1x3x9xf32>
      %66 = vector.shape_cast %65 : vector<1x1x3x9xf32> to vector<3x9xf32>
      %67 = vector.extract_strided_slice %66 {offsets = [0, 0], sizes = [3, 8], strides = [1, 1]} : vector<3x9xf32> to vector<3x8xf32>
      %c28_i32 = arith.constant 28 : i32
      %68 = arith.addi %c28_i32, %arg5 : i32
      %c0_51 = arith.constant 0 : index
      %69 = arith.index_cast %68 : i32 to index
      %c0_52 = arith.constant 0 : index
      %c0_53 = arith.constant 0 : index
      %70 = vector.load %arg1[%c0_51, %69, %c0_52, %c0_53] : memref<1x36x3x9xf32, #tpu.memory_space<vmem>>, vector<1x1x3x9xf32>
      %71 = vector.shape_cast %70 : vector<1x1x3x9xf32> to vector<3x9xf32>
      %72 = vector.extract_strided_slice %71 {offsets = [0, 0], sizes = [3, 8], strides = [1, 1]} : vector<3x9xf32> to vector<3x8xf32>
      %c19_i32_54 = arith.constant 19 : i32
      %73 = arith.addi %c19_i32_54, %arg5 : i32
      %c0_55 = arith.constant 0 : index
      %74 = arith.index_cast %73 : i32 to index
      %c0_56 = arith.constant 0 : index
      %c0_57 = arith.constant 0 : index
      %75 = vector.load %arg1[%c0_55, %74, %c0_56, %c0_57] : memref<1x36x3x9xf32, #tpu.memory_space<vmem>>, vector<1x1x3x9xf32>
      %76 = vector.shape_cast %75 : vector<1x1x3x9xf32> to vector<3x9xf32>
      %77 = vector.extract_strided_slice %76 {offsets = [0, 1], sizes = [3, 8], strides = [1, 1]} : vector<3x9xf32> to vector<3x8xf32>
      %c28_i32_58 = arith.constant 28 : i32
      %78 = arith.addi %c28_i32_58, %arg5 : i32
      %c0_59 = arith.constant 0 : index
      %79 = arith.index_cast %78 : i32 to index
      %c0_60 = arith.constant 0 : index
      %c0_61 = arith.constant 0 : index
      %80 = vector.load %arg1[%c0_59, %79, %c0_60, %c0_61] : memref<1x36x3x9xf32, #tpu.memory_space<vmem>>, vector<1x1x3x9xf32>
      %81 = vector.shape_cast %80 : vector<1x1x3x9xf32> to vector<3x9xf32>
      %82 = vector.extract_strided_slice %81 {offsets = [0, 1], sizes = [3, 8], strides = [1, 1]} : vector<3x9xf32> to vector<3x8xf32>
      %83 = tpu.concatenate %7, %12, %17, %22, %27, %32, %37, %42, %47, %52, %57, %62, %67, %72, %77, %82 in 0 : vector<3x8xf32>, vector<3x8xf32>, vector<3x8xf32>, vector<3x8xf32>, vector<3x8xf32>, vector<3x8xf32>, vector<3x8xf32>, vector<3x8xf32>, vector<3x8xf32>, vector<3x8xf32>, vector<3x8xf32>, vector<3x8xf32>, vector<3x8xf32>, vector<3x8xf32>, vector<3x8xf32>, vector<3x8xf32> -> vector<48x8xf32>
      %cst = arith.constant dense<0.000000e+00> : vector<8x8xf32>
      %84 = tpu.matmul %0, %83, %cst {dimension_numbers = #tpu.dot_dimension_numbers<[1], [0], [0], [1], [0, 0, 1, 1], [], []>} : vector<8x48xf32>, vector<48x8xf32>, vector<8x8xf32> -> vector<8x8xf32>
      %85 = vector.broadcast %1 : vector<8x1xf32> to vector<8x8xf32>
      %86 = arith.addf %84, %85 : vector<8x8xf32>
      %cst_62 = arith.constant 0.000000e+00 : f32
      %87 = vector.broadcast %cst_62 : f32 to vector<8x8xf32>
      %88 = arith.maximumf %86, %87 : vector<8x8xf32>
      %c0_63 = arith.constant 0 : index
      %89 = arith.index_cast %arg5 : i32 to index
      %c0_64 = arith.constant 0 : index
      %c0_65 = arith.constant 0 : index
      %90 = vector.load %arg4[%c0_63, %89, %c0_64, %c0_65] : memref<1x8x8x8xf32, #tpu.memory_space<vmem>>, vector<1x1x8x8xf32>
      %91 = vector.shape_cast %90 : vector<1x1x8x8xf32> to vector<8x8xf32>
      %92 = vector.shape_cast %88 : vector<8x8xf32> to vector<1x1x8x8xf32>
      tpu.vector_store %arg4[%c0_63, %89, %c0_64, %c0_65], %92 {strides = array<i32>} : memref<1x8x8x8xf32, #tpu.memory_space<vmem>>, vector<1x1x8x8xf32>,
    }
    %c8_i32_3 = arith.constant 8 : i32
    return
  }
  func.func @transform_0(%arg0: i32) -> (i32, i32, i32, i32) {
    %c0_i32 = arith.constant 0 : i32
    %c0_i32_0 = arith.constant 0 : i32
    %c0_i32_1 = arith.constant 0 : i32
    %c0_i32_2 = arith.constant 0 : i32
    return %arg0, %c0_i32, %c0_i32_0, %c0_i32_1 : i32, i32, i32, i32
  }
  func.func @transform_1(%arg0: i32) -> (i32, i32) {
    %c0_i32 = arith.constant 0 : i32
    %c0_i32_0 = arith.constant 0 : i32
    %c0_i32_1 = arith.constant 0 : i32
    return %c0_i32, %c0_i32_0 : i32, i32
  }
  func.func @transform_2(%arg0: i32) -> (i32, i32) {
    %c0_i32 = arith.constant 0 : i32
    %c0_i32_0 = arith.constant 0 : i32
    %c0_i32_1 = arith.constant 0 : i32
    return %c0_i32, %c0_i32_0 : i32, i32
  }
  func.func @transform_3(%arg0: i32) -> (i32, i32, i32, i32) {
    %c0_i32 = arith.constant 0 : i32
    %c0_i32_0 = arith.constant 0 : i32
    %c0_i32_1 = arith.constant 0 : i32
    %c0_i32_2 = arith.constant 0 : i32
    return %arg0, %c0_i32, %c0_i32_0, %c0_i32_1 : i32, i32, i32, i32
  }
}

</mosaic_0001>

<llo_original>
// kernel: tpu_custom_call.1
$region0: #{tpu_custom_call.1}
  #allocation0 [shape = 'u32[]', space=smem, size = 0x4, offset = 0x4, fixed_abs, tag = 'smem constant byte address 0x4 - core index']
  #allocation1 [shape = 'u32[144,128]{1,0:T(1,128)}', space=vmem, size = 0x12000, scoped, tag = 'internal scratch']
  %s0 = inlined_call_operand.vmem [shape: f32[1,36,3,9], index: 0, kind: input, shape index: {}]
  %s1 = inlined_call_operand.vmem [shape: f32[8,48], index: 1, kind: input, shape index: {}]
  %s2 = inlined_call_operand.vmem [shape: f32[8,1], index: 2, kind: input, shape index: {}]
  %s3 = inlined_call_operand.hbm [shape: f32[1,8,8,8], index: 3, kind: output, shape index: {}]
  %s4 = sld [smem:[#allocation0]]
  $region29: #{tpu_custom_call.1} parent=0
    _
  %s6 = ssub.s32 1, %s4
  %s7 = scalar_select 0, %s6, %s4
  $region1: #{tpu_custom_call.1} parent=0
    #allocation2 [shape = 'u8[32768]{0}', space=vmem, size = 0x8000, scoped, tag = 'output window, operand 0, single buffered']
    #allocation3 [shape = 's32[1]{0}', space=sflag, size = 0x4, scoped, tag = 'scoped memory for tpu_custom_call.1']
    %8 = vsyncpa [#allocation3], 0
    // Predicated region
    $region2: #{tpu_custom_call.1} parent=1 // pred_check
      _
    $region3: #{tpu_custom_call.1} parent=1 // pred_check_branch
      %10 = sbr.rel (0) target = $region5
    $region4: #{tpu_custom_call.1} parent=1 // pred_region
      _
    $region5: #{tpu_custom_call.1} parent=1 // pred_fallthru
      _
    // Predicated region
    $region6: #{tpu_custom_call.1} parent=1 // pred_check
      _
    $region7: #{tpu_custom_call.1} parent=1 // pred_check_branch
      %12 = sbr.rel (0) target = $region9
    $region8: #{tpu_custom_call.1} parent=1 // pred_region
      _
    $region9: #{tpu_custom_call.1} parent=1 // pred_fallthru
      _
    // Predicated region
    $region10: #{tpu_custom_call.1} parent=1 // pred_check
      _
    $region11: #{tpu_custom_call.1} parent=1 // pred_check_branch
      %14 = sbr.rel (0) target = $region13
    $region12: #{tpu_custom_call.1} parent=1 // pred_region
      _
    $region13: #{tpu_custom_call.1} parent=1 // pred_fallthru
      _
    %v15 = vld [vmem:[%s1] sm:$0xff]
    %v16 = vld [vmem:[%s2] sm:$0xff]
    loop: start=0, step=1, limit=8
    $region14: #{tpu_custom_call.1} parent=1 // loop_pre_header
      _
    $region15: #{tpu_custom_call.1} parent=1 // loop_header
      %s18 = sphi 0, %s22
      %p19 = scmp.ge.s32.totalorder %s18, 8
    $region16: #{tpu_custom_call.1} parent=1 // loop_header_branch
      %21 = sbr.rel (%p19) target = $region20
    $region17: #{tpu_custom_call.1} parent=1 // loop_body
      %s23 = smul.u32 %s18, 4
      %s24 = scalar_lea.vmem %s0, %s23
      %v25 = vld [vmem:[%s24] sm:$0x7]
      %s26 = sadd.s32 %s18, 9
      %s27 = smul.u32 %s26, 4
      %s28 = scalar_lea.vmem %s0, %s27
      %v29 = vld [vmem:[%s28] sm:$0x7]
      %s30 = sadd.s32 %s18, 18
      %s31 = smul.u32 %s30, 4
      %s32 = scalar_lea.vmem %s0, %s31
      %v33 = vld [vmem:[%s32] sm:$0x7]
      %s34 = sadd.s32 %s18, 27
      %s35 = smul.u32 %s34, 4
      %s36 = scalar_lea.vmem %s0, %s35
      %v37 = vld [vmem:[%s36] sm:$0x7]
      %s38 = sadd.s32 %s18, 1
      %s39 = smul.u32 %s38, 4
      %s40 = scalar_lea.vmem %s0, %s39
      %v41 = vld [vmem:[%s40] sm:$0x7]
      %s42 = sadd.s32 %s18, 10
      %s43 = smul.u32 %s42, 4
      %s44 = scalar_lea.vmem %s0, %s43
      %v45 = vld [vmem:[%s44] sm:$0x7]
      %s46 = sadd.s32 %s18, 19
      %s47 = smul.u32 %s46, 4
      %s48 = scalar_lea.vmem %s0, %s47
      %v49 = vld [vmem:[%s48] sm:$0x7]
      %s50 = sadd.s32 %s18, 28
      %s51 = smul.u32 %s50, 4
      %s52 = scalar_lea.vmem %s0, %s51
      %v53 = vld [vmem:[%s52] sm:$0x7]
      %v55 = vrot.slane %v29, 5
      %v58 = vrot.slane %v25, 2
      %59 = vrot.lane.b32.xlu0 %v58, 127
      %v60 = vpop.permute.xlu0 %59
      %v62 = vrot.slane %v29, 7
      %63 = vrot.lane.b32.xlu0 %v62, 127
      %v64 = vpop.permute.xlu0 %63
      %v67 = vrot.slane %v33, 4
      %v70 = vrot.slane %v37, 1
      %v72 = vrot.slane %v33, 6
      %73 = vrot.lane.b32.xlu0 %v72, 127
      %v74 = vpop.permute.xlu0 %73
      %v76 = vrot.slane %v37, 3
      %77 = vrot.lane.b32.xlu0 %v76, 127
      %v78 = vpop.permute.xlu0 %77
      %v81 = vrot.slane %v45, 5
      %v84 = vrot.slane %v41, 2
      %85 = vrot.lane.b32.xlu0 %v84, 127
      %v86 = vpop.permute.xlu0 %85
      %v88 = vrot.slane %v45, 7
      %89 = vrot.lane.b32.xlu0 %v88, 127
      %v90 = vpop.permute.xlu0 %89
      %v93 = vrot.slane %v49, 4
      %v96 = vrot.slane %v53, 1
      %v98 = vrot.slane %v49, 6
      %99 = vrot.lane.b32.xlu0 %v98, 127
      %v100 = vpop.permute.xlu0 %99
      %v102 = vrot.slane %v53, 3
      %103 = vrot.lane.b32.xlu0 %v102, 127
      %v104 = vpop.permute.xlu0 %103
      %vm106 = vcmask 1042432
      %v107 = vsel %vm106, %v25, %v55
      %vm108 = vcmask 1045504
      %v109 = vsel %vm108, %v107, %v60
      %vm110 = vcmask 1040384
      %v111 = vsel %vm110, %v60, %v64
      %vm112 = vcmask 1043456
      %v113 = vsel %vm112, %v111, %v67
      %vm114 = vcmask 1046528
      %v115 = vsel %vm114, %v113, %v70
      %vm116 = vcmask 1041408
      %v117 = vsel %vm116, %v70, %v74
      %vm118 = vcmask 1044480
      %v119 = vsel %vm118, %v117, %v78
      %v120 = vsel %vm106, %v41, %v81
      %v121 = vsel %vm108, %v120, %v86
      %v122 = vsel %vm110, %v86, %v90
      %v123 = vsel %vm112, %v122, %v93
      %v124 = vsel %vm114, %v123, %v96
      %v125 = vsel %vm116, %v96, %v100
      %v126 = vsel %vm118, %v125, %v104
      %128 = vset.pattern.permute.xlu0 0
      %129 = vperm.xlu0 %128, %v16
      %v130 = vpop.permute.xlu0 %129
      %vm132 = vcmask 392192
      %v134 = vsel %vm132, %v15, 0
      %136 = vmatprep.subr.mxu0 0.0
      %137 = vmatpush1.msra.mxu0 0.0
      %138 = vmatprep.subr.mxu0 0.0
      %139 = vmatpush1.msra.mxu0 0.0
      %140 = vmatprep.subr.mxu0 0.0
      %141 = vmatpush1.msra.mxu0 0.0
      %142 = vmatprep.subr.mxu0 0.0
      %143 = vmatpush1.msra.mxu0 0.0
      %144 = vmatprep.subr.mxu0 0.0
      %145 = vmatpush1.msra.mxu0 0.0
      %146 = vmatprep.subr.mxu0 0.0
      %147 = vmatpush1.msra.mxu0 0.0
      %148 = vmatprep.subr.mxu0 0.0
      %149 = vmatpush1.msra.mxu0 0.0
      %150 = vmatprep.subr.mxu0 0.0
      %151 = vmatpush1.msra.mxu0 0.0
      %152 = vmatprep.subr.mxu0 0.0
      %153 = vmatpush1.msra.mxu0 0.0
      %154 = vmatprep.subr.mxu0 0.0
      %155 = vmatpush1.msra.mxu0 0.0
      %156 = vmatprep.subr.mxu0 0.0
      %157 = vmatpush1.msra.mxu0 %v126
      %158 = vmatprep.subr.mxu0 0.0
      %159 = vmatpush1.msra.mxu0 %v124
      %160 = vmatprep.subr.mxu0 0.0
      %161 = vmatpush1.msra.mxu0 %v121
      %162 = vmatprep.subr.mxu0 0.0
      %163 = vmatpush1.msra.mxu0 %v119
      %164 = vmatprep.subr.mxu0 0.0
      %165 = vmatpush1.msra.mxu0 %v115
      %166 = vmatprep.subr.mxu0 0.0
      %167 = vmatpush1.msra.mxu0 %v109
      %168 = vmatprep.subr.mxu0 0.0
      %169 = vmatpush2.msra.mxu0 0.0
      %170 = vmatprep.subr.mxu0 0.0
      %171 = vmatpush2.msra.mxu0 0.0
      %172 = vmatprep.subr.mxu0 0.0
      %173 = vmatpush2.msra.mxu0 0.0
      %174 = vmatprep.subr.mxu0 0.0
      %175 = vmatpush2.msra.mxu0 0.0
      %176 = vmatprep.subr.mxu0 0.0
      %177 = vmatpush2.msra.mxu0 0.0
      %178 = vmatprep.subr.mxu0 0.0
      %179 = vmatpush2.msra.mxu0 0.0
      %180 = vmatprep.subr.mxu0 0.0
      %181 = vmatpush2.msra.mxu0 0.0
      %182 = vmatprep.subr.mxu0 0.0
      %183 = vmatpush2.msra.mxu0 0.0
      %184 = vmatprep.subr.mxu0 0.0
      %185 = vmatpush2.msra.mxu0 0.0
      %186 = vmatprep.subr.mxu0 0.0
      %187 = vmatpush2.msra.mxu0 0.0
      %188 = vmatprep.subr.mxu0 0.0
      %189 = vmatpush2.msra.mxu0 0.0
      %190 = vmatprep.subr.mxu0 0.0
      %191 = vmatpush2.msra.mxu0 0.0
      %192 = vmatprep.subr.mxu0 0.0
      %193 = vmatpush2.msra.mxu0 0.0
      %194 = vmatprep.subr.mxu0 0.0
      %195 = vmatpush2.msra.mxu0 0.0
      %196 = vmatprep.subr.mxu0 0.0
      %197 = vmatpush2.msra.mxu0 0.0
      %198 = vmatprep.subr.mxu0 0.0
      %199 = vmatpush2.msra.mxu0 0.0
      %200 = vmatprep.mubr.f32.mxu0 0.0
      %201 = vmatmul.mubr.f32.gmra.mxu0 %v134
      %v202 = vpop.f32.mrf.mxu0
      %v203 = vadd.f32 %v130, %v202
      %v204 = vpop.f32.mrf.mxu0
      %205 = vdwg.mxu0
      %v206 = vmax.f32 %v203, 0.0
      %s207 = smul.u32 %s18, 8
      %s208 = scalar_lea.vmem [#allocation2], %s207
      %vm209 = vcmask 64512
      %210 = vst.msk [vmem:[%s208] sm:$0xff] %vm209, %v206
    $region18: #{tpu_custom_call.1} parent=1 // loop_footer
      %s22 = sadd.s32 1, %s18
    $region19: #{tpu_custom_call.1} parent=1 // loop_footer_branch
      %17 = sbr.rel target = $region15
    $region20: #{tpu_custom_call.1} parent=1 // loop_exit
      _
    // Predicated region
    $region21: #{tpu_custom_call.1} parent=1 // pred_check
      _
    $region22: #{tpu_custom_call.1} parent=1 // pred_check_branch
      %212 = sbr.rel (0) target = $region24
    $region23: #{tpu_custom_call.1} parent=1 // pred_region
      %s214 = ssub.s32 1024, 1024
      %215 = vsyncadd [#allocation3], %s214
      %s216 = sshll.u32 [#allocation2], 4
      %s217 = int_to_ptr.vmem [resolvable:$true] %s216
      %222 = dma.vmem_to_hbm [thread:$0]  %s217, 1024, %s3, [#allocation3], 128, 128, 8
    $region24: #{tpu_custom_call.1} parent=1 // pred_fallthru
      _
    // Predicated region
    $region25: #{tpu_custom_call.1} parent=1 // pred_check
      _
    $region26: #{tpu_custom_call.1} parent=1 // pred_check_branch
      %224 = sbr.rel (0) target = $region28
    $region27: #{tpu_custom_call.1} parent=1 // pred_region
      %225 = dma.done [#allocation3], 1024
    $region28: #{tpu_custom_call.1} parent=1 // pred_fallthru
      _
    %226 = vsyncpa [#allocation3], 1

</llo_original>
